<compile_context>
chip_gen: v7x
topology: tpu7x:2x2x1
jax: 0.10.0
libtpu: 0.0.40
codegen_flags: <defaults>
</compile_context>

<pallas_src>
import jax
import jax.numpy as jnp
from jax.experimental import pallas as pl
from jax.experimental.pallas import tpu as pltpu

LANE = 128        # TPU lane width
MAX_TB = 4096     # max batch-lanes per grid step (D=32 f32 -> ~1 MB/block)


def _round_up(x, m):
    return ((x + m - 1) // m) * m


def poincare_dist_kernel(src_ref, dst_ref, out_ref):
    # src_ref / dst_ref: (D, TB) with batch on lanes; out_ref: (1, TB)
    x = src_ref[...]
    y = dst_ref[...]
    if x.dtype != jnp.float32:
        x = x.astype(jnp.float32)
    if y.dtype != jnp.float32:
        y = y.astype(jnp.float32)

    diff = x - y
    sq = jnp.sum(diff * diff, axis=0, keepdims=True)   # ||x - y||^2  -> (1, TB)
    xn = jnp.sum(x * x, axis=0, keepdims=True)          # ||x||^2
    yn = jnp.sum(y * y, axis=0, keepdims=True)          # ||y||^2

    eps = 1e-7
    denom = jnp.maximum((1.0 - xn) * (1.0 - yn), eps)
    arg = jnp.maximum(1.0 + 2.0 * sq / denom, 1.0 + eps)
    # arccosh(arg) = log(arg + sqrt((arg-1)*(arg+1)))  (factored form avoids
    # catastrophic cancellation of arg*arg - 1 near arg == 1)
    out_ref[...] = jnp.log(arg + jnp.sqrt((arg - 1.0) * (arg + 1.0)))


def poincare_dist(src_t, dst_t, max_tb=MAX_TB):
    """Poincare-ball distance for column-paired embeddings.

    src_t, dst_t: (D, B) float32 — batch on the last (lane) axis.
    Returns: (B,) float32 distances.
    """
    D, B = src_t.shape
    assert dst_t.shape == (D, B)

    # lane-aligned batch tile, capped; pad the batch to a multiple of the tile
    tb = min(max_tb, _round_up(B, LANE))
    b_pad = _round_up(B, tb)
    if b_pad != B:
        pad = ((0, 0), (0, b_pad - B))
        src_t = jnp.pad(src_t, pad)   # zero columns are harmless (arg clamped)
        dst_t = jnp.pad(dst_t, pad)

    grid = (b_pad // tb,)
    out = pl.pallas_call(
        poincare_dist_kernel,
        out_shape=jax.ShapeDtypeStruct((1, b_pad), jnp.float32),
        grid_spec=pltpu.PrefetchScalarGridSpec(
            num_scalar_prefetch=0,
            grid=grid,
            in_specs=[
                pl.BlockSpec((D, tb), lambda i: (0, i)),
                pl.BlockSpec((D, tb), lambda i: (0, i)),
            ],
            out_specs=pl.BlockSpec((1, tb), lambda i: (0, i)),
        ),
        compiler_params=pltpu.CompilerParams(
            dimension_semantics=("parallel",)),
    )(src_t, dst_t)
    return out[0, :B]


class DisModelPallas:
    """JAX/Pallas counterpart of sympa DisModel (Poincare-ball manifold)."""

    def __init__(self, num_points, dims, key):
        # Deterministic synthetic embedding table; small scale keeps all
        # points strictly inside the unit ball (valid Poincare coordinates).
        # Stored transposed (D, N) so gathers land directly in the
        # batch-on-lanes layout the kernel consumes.
        self.embeddings_t = (
            jax.random.normal(key, (dims, num_points), dtype=jnp.float32) * 1e-2
        )

    @property
    def embeddings(self):
        # (num_points, dims) view, matching the PyTorch module's layout.
        return self.embeddings_t.T

    def __call__(self, input_triplet):
        src_index = input_triplet[:, 0]
        dst_index = input_triplet[:, 1]
        # glue gather (XLA); see TODO(synk) at top of file about fusing it.
        src_t = jnp.take(self.embeddings_t, src_index, axis=1)  # (D, B)
        dst_t = jnp.take(self.embeddings_t, dst_index, axis=1)  # (D, B)
        return poincare_dist(src_t, dst_t)

    def embeds_norm(self):
        return jnp.linalg.norm(self.embeddings_t, axis=0)


def _reference_dist(src, dst):
    # src, dst: (B, D)
    sq = jnp.sum((src - dst) ** 2, axis=-1)
    xn = jnp.sum(src * src, axis=-1)
    yn = jnp.sum(dst * dst, axis=-1)
    arg = 1.0 + 2.0 * sq / jnp.maximum((1.0 - xn) * (1.0 - yn), 1e-7)
    return jnp.arccosh(jnp.maximum(arg, 1.0 + 1e-7))


if __name__ == "__main__":
    key = jax.random.PRNGKey(0)
    k_emb, k_idx, k_idx2 = jax.random.split(key, 3)

    num_points, dims, batch = 64, 32, 8
    model = DisModelPallas(num_points=num_points, dims=dims, key=k_emb)

    # input_triplet: (batch, 3) int32 -> columns (src_index, dst_index, label)
    input_triplet = jax.random.randint(
        k_idx, (batch, 3), minval=0, maxval=num_points, dtype=jnp.int32)

    dist = model(input_triplet)
    dist = jax.block_until_ready(dist)

    # sanity check against a pure-JAX reference of the same manifold distance
    src = jnp.take(model.embeddings, input_triplet[:, 0], axis=0)
    dst = jnp.take(model.embeddings, input_triplet[:, 1], axis=0)
    ref = _reference_dist(src, dst)
    assert dist.shape == (batch,)
    assert jnp.allclose(dist, ref, atol=1e-5, rtol=1e-5)

    # second check: non-aligned batch exercising the padding path and a
    # multi-step grid (small tile cap forces grid > 1).
    batch2 = 300
    trip2 = jax.random.randint(
        k_idx2, (batch2, 3), minval=0, maxval=num_points, dtype=jnp.int32)
    src2_t = jnp.take(model.embeddings_t, trip2[:, 0], axis=1)
    dst2_t = jnp.take(model.embeddings_t, trip2[:, 1], axis=1)
    dist2 = jax.block_until_ready(poincare_dist(src2_t, dst2_t, max_tb=128))
    ref2 = _reference_dist(src2_t.T, dst2_t.T)
    assert dist2.shape == (batch2,)
    assert jnp.allclose(dist2, ref2, atol=1e-5, rtol=1e-5)

    print("KERNEL_OK")
</pallas_src>

<mosaic_0001>
module attributes {stable_mosaic.version = 11 : i64} {
  func.func @poincare_dist_kernel(%arg0: i32, %arg1: memref<32x128xf32, #tpu.memory_space<vmem>>, %arg2: memref<32x128xf32, #tpu.memory_space<vmem>>, %arg3: memref<1x128xf32, #tpu.memory_space<vmem>>) attributes {dimension_semantics = [#tpu.dimension_semantics<parallel>], iteration_bounds = array<i64: 1>, scalar_prefetch = 0 : i64, scratch_operands = 0 : i64, tpu.core_type = #tpu.core_type<tc>, window_params = [{transform_indices = @transform_0, window_bounds = array<i64: 32, 128>}, {transform_indices = @transform_1, window_bounds = array<i64: 32, 128>}, {transform_indices = @transform_2, window_bounds = array<i64: 1, 128>}]} {
    %c0 = arith.constant 0 : index
    %c0_0 = arith.constant 0 : index
    %0 = vector.load %arg1[%c0, %c0_0] : memref<32x128xf32, #tpu.memory_space<vmem>>, vector<32x128xf32>
    %c0_1 = arith.constant 0 : index
    %c0_2 = arith.constant 0 : index
    %1 = vector.load %arg2[%c0_1, %c0_2] : memref<32x128xf32, #tpu.memory_space<vmem>>, vector<32x128xf32>
    %2 = arith.subf %0, %1 : vector<32x128xf32>
    %3 = arith.mulf %2, %2 : vector<32x128xf32>
    %cst = arith.constant dense<0.000000e+00> : vector<128xf32>
    %4 = vector.multi_reduction <add>, %3, %cst [0] : vector<32x128xf32> to vector<128xf32>
    %5 = vector.shape_cast %4 : vector<128xf32> to vector<1x128xf32>
    %6 = arith.mulf %0, %0 : vector<32x128xf32>
    %cst_3 = arith.constant dense<0.000000e+00> : vector<128xf32>
    %7 = vector.multi_reduction <add>, %6, %cst_3 [0] : vector<32x128xf32> to vector<128xf32>
    %8 = vector.shape_cast %7 : vector<128xf32> to vector<1x128xf32>
    %9 = arith.mulf %1, %1 : vector<32x128xf32>
    %cst_4 = arith.constant dense<0.000000e+00> : vector<128xf32>
    %10 = vector.multi_reduction <add>, %9, %cst_4 [0] : vector<32x128xf32> to vector<128xf32>
    %11 = vector.shape_cast %10 : vector<128xf32> to vector<1x128xf32>
    %cst_5 = arith.constant 1.000000e+00 : f32
    %12 = vector.broadcast %cst_5 : f32 to vector<1x128xf32>
    %13 = arith.subf %12, %8 : vector<1x128xf32>
    %cst_6 = arith.constant 1.000000e+00 : f32
    %14 = vector.broadcast %cst_6 : f32 to vector<1x128xf32>
    %15 = arith.subf %14, %11 : vector<1x128xf32>
    %16 = arith.mulf %13, %15 : vector<1x128xf32>
    %cst_7 = arith.constant 1.000000e-07 : f32
    %17 = vector.broadcast %cst_7 : f32 to vector<1x128xf32>
    %18 = arith.maximumf %16, %17 : vector<1x128xf32>
    %cst_8 = arith.constant 2.000000e+00 : f32
    %19 = vector.broadcast %cst_8 : f32 to vector<1x128xf32>
    %20 = arith.mulf %19, %5 : vector<1x128xf32>
    %21 = arith.divf %20, %18 : vector<1x128xf32>
    %cst_9 = arith.constant 1.000000e+00 : f32
    %22 = vector.broadcast %cst_9 : f32 to vector<1x128xf32>
    %23 = arith.addf %22, %21 : vector<1x128xf32>
    %cst_10 = arith.constant 1.00000012 : f32
    %24 = vector.broadcast %cst_10 : f32 to vector<1x128xf32>
    %25 = arith.maximumf %23, %24 : vector<1x128xf32>
    %cst_11 = arith.constant 1.000000e+00 : f32
    %26 = vector.broadcast %cst_11 : f32 to vector<1x128xf32>
    %27 = arith.subf %25, %26 : vector<1x128xf32>
    %cst_12 = arith.constant 1.000000e+00 : f32
    %28 = vector.broadcast %cst_12 : f32 to vector<1x128xf32>
    %29 = arith.addf %25, %28 : vector<1x128xf32>
    %30 = arith.mulf %27, %29 : vector<1x128xf32>
    %31 = math.sqrt %30 : vector<1x128xf32>
    %32 = arith.addf %25, %31 : vector<1x128xf32>
    %33 = math.log %32 : vector<1x128xf32>
    %c0_13 = arith.constant 0 : index
    %c0_14 = arith.constant 0 : index
    %34 = vector.load %arg3[%c0_13, %c0_14] : memref<1x128xf32, #tpu.memory_space<vmem>>, vector<1x128xf32>
    tpu.vector_store %arg3[%c0_13, %c0_14], %33 {strides = array<i32>} : memref<1x128xf32, #tpu.memory_space<vmem>>, vector<1x128xf32>,
    return
  }
  func.func @transform_0(%arg0: i32) -> (i32, i32) {
    %c0_i32 = arith.constant 0 : i32
    %c0_i32_0 = arith.constant 0 : i32
    return %c0_i32, %arg0 : i32, i32
  }
  func.func @transform_1(%arg0: i32) -> (i32, i32) {
    %c0_i32 = arith.constant 0 : i32
    %c0_i32_0 = arith.constant 0 : i32
    return %c0_i32, %arg0 : i32, i32
  }
  func.func @transform_2(%arg0: i32) -> (i32, i32) {
    %c0_i32 = arith.constant 0 : i32
    %c0_i32_0 = arith.constant 0 : i32
    return %c0_i32, %arg0 : i32, i32
  }
}

</mosaic_0001>

<llo_original>
// kernel: tpu_custom_call.1
$region0: #{tpu_custom_call.1}
  #allocation0 [shape = 'u32[]', space=smem, size = 0x4, offset = 0x4, fixed_abs, tag = 'smem constant byte address 0x4 - core index']
  #allocation1 [shape = 'u32[144,128]{1,0:T(1,128)}', space=vmem, size = 0x12000, scoped, tag = 'internal scratch']
  %s0 = inlined_call_operand.hbm [shape: f32[32,128], index: 0, kind: input, shape index: {}]
  %s1 = inlined_call_operand.hbm [shape: f32[32,128], index: 1, kind: input, shape index: {}]
  %s2 = inlined_call_operand.hbm [shape: f32[1,128], index: 2, kind: output, shape index: {}]
  %s3 = sld [smem:[#allocation0]]
  $region26: #{tpu_custom_call.1} parent=0
    _
  %s5 = ssub.s32 1, %s3
  %s6 = scalar_select 0, %s5, %s3
  $region1: #{tpu_custom_call.1} parent=0
    #allocation2 [shape = 'u8[16384]{0}', space=vmem, size = 0x4000, scoped, tag = 'input window, operand 0, single buffered']
    #allocation3 [shape = 's32[1]{0}', space=sflag, size = 0x4, scoped, tag = 'scoped memory for tpu_custom_call.1']
    #allocation4 [shape = 's32[1]{0}', space=sflag, size = 0x4, scoped, tag = 'scoped memory for tpu_custom_call.1']
    #allocation5 [shape = 'u8[16384]{0}', space=vmem, size = 0x4000, scoped, tag = 'input window, operand 1, single buffered']
    #allocation6 [shape = 's32[1]{0}', space=sflag, size = 0x4, scoped, tag = 'scoped memory for tpu_custom_call.1']
    #allocation7 [shape = 'u8[512]{0}', space=vmem, size = 0x400, scoped, tag = 'output window, operand 0, single buffered']
    %7 = vsyncpa [#allocation3], 0
    %8 = vsyncpa [#allocation6], 0
    %9 = vsyncpa [#allocation4], 0
    // Predicated region
    $region2: #{tpu_custom_call.1} parent=1 // pred_check
      _
    $region3: #{tpu_custom_call.1} parent=1 // pred_check_branch
      %11 = sbr.rel (0) target = $region5
    $region4: #{tpu_custom_call.1} parent=1 // pred_region
      %s13 = ssub.s32 512, 512
      %14 = vsyncadd [#allocation3], %s13
      %s15 = sshll.u32 [#allocation2], 4
      %s16 = int_to_ptr.vmem [resolvable:$true] %s15
      %21 = dma.hbm_to_vmem [thread:$0]  %s0, 512, %s16, [#allocation3], 128, 128, 8
    $region5: #{tpu_custom_call.1} parent=1 // pred_fallthru
      _
    // Predicated region
    $region6: #{tpu_custom_call.1} parent=1 // pred_check
      _
    $region7: #{tpu_custom_call.1} parent=1 // pred_check_branch
      %23 = sbr.rel (0) target = $region9
    $region8: #{tpu_custom_call.1} parent=1 // pred_region
      %s25 = ssub.s32 512, 512
      %26 = vsyncadd [#allocation6], %s25
      %s27 = sshll.u32 [#allocation5], 4
      %s28 = int_to_ptr.vmem [resolvable:$true] %s27
      %33 = dma.hbm_to_vmem [thread:$0]  %s1, 512, %s28, [#allocation6], 128, 128, 8
    $region9: #{tpu_custom_call.1} parent=1 // pred_fallthru
      _
    // Predicated region
    $region10: #{tpu_custom_call.1} parent=1 // pred_check
      _
    $region11: #{tpu_custom_call.1} parent=1 // pred_check_branch
      %35 = sbr.rel (0) target = $region13
    $region12: #{tpu_custom_call.1} parent=1 // pred_region
      %36 = dma.done [#allocation3], 512
    $region13: #{tpu_custom_call.1} parent=1 // pred_fallthru
      _
    // Predicated region
    $region14: #{tpu_custom_call.1} parent=1 // pred_check
      _
    $region15: #{tpu_custom_call.1} parent=1 // pred_check_branch
      %38 = sbr.rel (0) target = $region17
    $region16: #{tpu_custom_call.1} parent=1 // pred_region
      %39 = dma.done [#allocation6], 512
    $region17: #{tpu_custom_call.1} parent=1 // pred_fallthru
      _
    %v40 = vld [vmem:[#allocation2] sm:$0xff]
    %v41 = vld [vmem:[#allocation2 + $0x8] sm:$0xff]
    %v42 = vld [vmem:[#allocation2 + $0x10] sm:$0xff]
    %v43 = vld [vmem:[#allocation2 + $0x18] sm:$0xff]
    %v44 = vld [vmem:[#allocation5] sm:$0xff]
    %v45 = vld [vmem:[#allocation5 + $0x8] sm:$0xff]
    %v46 = vld [vmem:[#allocation5 + $0x10] sm:$0xff]
    %v47 = vld [vmem:[#allocation5 + $0x18] sm:$0xff]
    %v48 = vsub.f32 %v40, %v44
    %v49 = vsub.f32 %v41, %v45
    %v50 = vsub.f32 %v42, %v46
    %v51 = vsub.f32 %v43, %v47
    %v52 = vmul.f32 %v48, %v48
    %v53 = vmul.f32 %v49, %v49
    %v54 = vmul.f32 %v50, %v50
    %v55 = vmul.f32 %v51, %v51
    %v56 = vadd.f32 %v52, %v53
    %v57 = vadd.f32 %v56, %v54
    %v58 = vadd.f32 %v57, %v55
    %v59 = vrot.slane %v58, 4
    %v60 = vadd.f32 %v58, %v59
    %v61 = vrot.slane %v60, 2
    %v62 = vadd.f32 %v60, %v61
    %v63 = vrot.slane %v62, 1
    %v64 = vadd.f32 %v62, %v63
    %v65 = vmul.f32 %v40, %v40
    %v66 = vmul.f32 %v41, %v41
    %v67 = vmul.f32 %v42, %v42
    %v68 = vmul.f32 %v43, %v43
    %v69 = vadd.f32 %v65, %v66
    %v70 = vadd.f32 %v69, %v67
    %v71 = vadd.f32 %v70, %v68
    %v72 = vrot.slane %v71, 4
    %v73 = vadd.f32 %v71, %v72
    %v74 = vrot.slane %v73, 2
    %v75 = vadd.f32 %v73, %v74
    %v76 = vrot.slane %v75, 1
    %v77 = vadd.f32 %v75, %v76
    %v78 = vmul.f32 %v44, %v44
    %v79 = vmul.f32 %v45, %v45
    %v80 = vmul.f32 %v46, %v46
    %v81 = vmul.f32 %v47, %v47
    %v82 = vadd.f32 %v78, %v79
    %v83 = vadd.f32 %v82, %v80
    %v84 = vadd.f32 %v83, %v81
    %v85 = vrot.slane %v84, 4
    %v86 = vadd.f32 %v84, %v85
    %v87 = vrot.slane %v86, 2
    %v88 = vadd.f32 %v86, %v87
    %v89 = vrot.slane %v88, 1
    %v90 = vadd.f32 %v88, %v89
    %v91 = vsub.f32 1.0, %v77
    %v92 = vsub.f32 1.0, %v90
    %v93 = vmul.f32 %v91, %v92
    %v94 = vmax.f32 %v93, 1e-07
    %v95 = vmul.f32 %v64, 2.0
    %v96 = vrcp.pop %v94
    %v97 = vmul.f32 %v95, %v96
    %v98 = vadd.f32 %v97, 1.0
    %v99 = vmax.f32 %v98, 1.0000001
    %v100 = vsub.f32 %v99, 1.0
    %v101 = vadd.f32 %v99, 1.0
    %v102 = vmul.f32 %v100, %v101
    %v103 = vrsqrt.pop %v102
    %v104 = vmul.f32 %v102, %v103
    %vm105 = vcmp.eq.f32.partialorder %v102, inf
    %v106 = vsel %vm105, %v102, %v104
    %vm107 = vcmp.eq.f32.partialorder %v102, 0.0
    %v108 = vand.u32 %v102, 2147483648
    %v109 = vsel %vm107, %v108, %v106
    %v110 = vadd.f32 %v99, %v109
    %v111 = vlog2.pop %v110
    %v112 = vmul.f32 %v111, 0.6931472
    %113 = vst [vmem:[#allocation7] sm:$0x1] %v112
    // Predicated region
    $region18: #{tpu_custom_call.1} parent=1 // pred_check
      _
    $region19: #{tpu_custom_call.1} parent=1 // pred_check_branch
      %115 = sbr.rel (0) target = $region21
    $region20: #{tpu_custom_call.1} parent=1 // pred_region
      %s117 = ssub.s32 16, 16
      %118 = vsyncadd [#allocation4], %s117
      %s120 = sshll.u32 [#allocation7], 4
      %s121 = int_to_ptr.vmem [resolvable:$true] %s120
      %123 = dma.vmem_to_hbm [thread:$0]  %s121, 16, %s2, [#allocation4]
    $region21: #{tpu_custom_call.1} parent=1 // pred_fallthru
      _
    // Predicated region
    $region22: #{tpu_custom_call.1} parent=1 // pred_check
      _
    $region23: #{tpu_custom_call.1} parent=1 // pred_check_branch
      %125 = sbr.rel (0) target = $region25
    $region24: #{tpu_custom_call.1} parent=1 // pred_region
      %126 = dma.done [#allocation4], 16
    $region25: #{tpu_custom_call.1} parent=1 // pred_fallthru
      _
    %127 = vsyncpa [#allocation3], 1
    %128 = vsyncpa [#allocation6], 1
    %129 = vsyncpa [#allocation4], 1

</llo_original>
